<compile_context>
chip_gen: v7x
topology: tpu7x:2x2x1
jax: 0.10.0
libtpu: 0.0.40
codegen_flags: <defaults>
</compile_context>

<pallas_src>
import numpy as np

import jax
import jax.numpy as jnp
from jax.experimental import pallas as pl
from jax.experimental.pallas import tpu as pltpu


def _penc3d_kernel(mult_ref, phase_ref, sel_ref, yz_ref, out_ref):
    """One (xblk, YZC) slab of the positional encoding.

    mult_ref : (1, CXP)   f32  inv_freq for x-type channels (0 in padding).
    phase_ref: (1, CXP)   f32  0 for sin channels, pi/2 for cos channels.
    sel_ref  : (CXP, YZC) bf16 0/1 selection matrix expanding the compact
                               x-channel block onto the flattened (y,z,ch) lanes.
    yz_ref   : (1, YZC)   f32  precomputed y/z-channel values (0 on x lanes).
    out_ref  : (xblk, YZC)     out[x, (y,z,ch)] = (x_emb @ sel)[x,.] + yz_row.
    """
    xblk = out_ref.shape[0]
    x0 = (pl.program_id(0) * xblk).astype(jnp.float32)
    x_pos = x0 + jax.lax.broadcasted_iota(jnp.int32, (xblk, 1), 0).astype(jnp.float32)

    # Compact per-x sin/cos block: CXP transcendentals per row instead of YZC.
    x_emb = jnp.sin(x_pos * mult_ref[...] + phase_ref[...])          # (xblk, CXP)

    # Expand on the MXU.  hi/lo bf16 split: since sel is exactly 0/1, the two
    # bf16 matmuls with f32 accumulation reproduce the f32 sins to ~4e-6.
    hi = x_emb.astype(jnp.bfloat16)
    lo = (x_emb - hi.astype(jnp.float32)).astype(jnp.bfloat16)
    sel = sel_ref[...]
    x_full = (jnp.dot(hi, sel, preferred_element_type=jnp.float32)
              + jnp.dot(lo, sel, preferred_element_type=jnp.float32))  # (xblk, YZC)

    out_ref[...] = (x_full + yz_ref[...]).astype(out_ref.dtype)


def _channel_params(org_ch):
    """Per-channel (freq, axis_id, is_cos) matching PositionalEncoding3D."""
    C = int(np.ceil(org_ch / 6) * 2)
    if C % 2:
        C += 1
    inv_freq = (
        1.0 / (10000.0 ** (np.arange(0, C, 2, dtype=np.float32) / np.float32(C)))
    ).astype(np.float32)

    freq = np.zeros((org_ch,), np.float32)
    axis_id = np.zeros((org_ch,), np.int32)   # 0 -> x, 1 -> y, 2 -> z
    is_cos = np.zeros((org_ch,), np.bool_)
    for c in range(org_ch):
        region = c // C                        # org_ch <= 3*C always
        cc = c - region * C
        freq[c] = inv_freq[cc // 2]
        axis_id[c] = region
        is_cos[c] = (cc % 2 == 1)
    return C, freq, axis_id, is_cos


def _round_up(a, b):
    return ((a + b - 1) // b) * b


def _pick_x_block(x_pad, yzc, align, target_f32_bytes=6 * 1024 * 1024):
    """Largest aligned x-tile under a ~6 MiB (f32) VMEM budget; keep >= 2 grid
    steps when the shape allows so v7x megacore has work for both cores."""
    max_rows = max(align, target_f32_bytes // max(1, yzc * 4))
    xblk = min(x_pad, (max_rows // align) * align)
    xblk = max(xblk, align)
    if xblk >= x_pad and x_pad >= 2 * align:       # force >= 2 parallel steps
        xblk = _round_up((x_pad + 1) // 2, align)
    return min(xblk, x_pad)


def positional_encoding_3d(x, org_channels):
    """x: (B, X, Y, Z, CH). Returns the (B, X, Y, Z, CH) positional encoding."""
    B, X, Y, Z, CH = x.shape
    assert CH == org_channels, "channel dim must match module's `channels`"
    out_dtype = x.dtype

    C, freq, axis_id, is_cos = _channel_params(CH)
    cx = int(np.sum(axis_id == 0))                 # x-type channels = prefix [0, cx)
    cxp = max(128, _round_up(max(cx, 1), 128))     # lane-pad the compact block
    YZC = Y * Z * CH

    # Per-x-channel frequency / phase rows (cos(t) computed as sin(t + pi/2)).
    mult = np.zeros((1, cxp), np.float32)
    phase = np.zeros((1, cxp), np.float32)
    mult[0, :cx] = freq[:cx]
    phase[0, :cx] = np.where(is_cos[:cx], np.float32(np.pi / 2), np.float32(0.0))

    # Constant y/z-channel row (independent of x): exact np.sin / np.cos.
    pos_y = np.arange(Y, dtype=np.float32)
    pos_z = np.arange(Z, dtype=np.float32)
    yz = np.zeros((Y, Z, CH), np.float32)
    for c in range(CH):
        if axis_id[c] == 1:
            t = pos_y * freq[c]
            yz[:, :, c] = (np.cos(t) if is_cos[c] else np.sin(t))[:, None]
        elif axis_id[c] == 2:
            t = pos_z * freq[c]
            yz[:, :, c] = (np.cos(t) if is_cos[c] else np.sin(t))[None, :]
    yz_row = np.ascontiguousarray(yz.reshape(1, YZC))

    # 0/1 selection matrix: expands (xblk, cxp) x-channel values onto the
    # flattened (y, z, ch) lane axis (channel c repeats every CH lanes).
    sel = np.zeros((cxp, Y, Z, CH), np.float32)
    for c in range(cx):
        sel[c, :, :, c] = 1.0
    sel = np.ascontiguousarray(sel.reshape(cxp, YZC))

    itemsize = np.dtype(out_dtype).itemsize
    align = max(8, 32 // itemsize)            # 8 f32, 16 bf16, 32 int8/fp8 rows
    x_pad = X if X >= align else align        # tiny X: pad rows, slice afterwards
    xblk = _pick_x_block(x_pad, YZC, align)
    grid_x = pl.cdiv(x_pad, xblk)

    cost = pl.CostEstimate(
        flops=int(4 * x_pad * cxp * YZC + 4 * x_pad * YZC),
        transcendentals=int(x_pad * cxp),
        bytes_accessed=int(x_pad * YZC * itemsize + cxp * YZC * 2
                           + (2 * cxp + YZC) * 4),
    )

    # TODO(synk): when YZC is not a multiple of 128 (ragged shapes) the last
    # lane vreg is a masked store; acceptable for the minority ragged case.
    enc = pl.pallas_call(
        _penc3d_kernel,
        out_shape=jax.ShapeDtypeStruct((x_pad, YZC), out_dtype),
        grid=(grid_x,),
        in_specs=[
            pl.BlockSpec((1, cxp), lambda i: (0, 0)),
            pl.BlockSpec((1, cxp), lambda i: (0, 0)),
            pl.BlockSpec((cxp, YZC), lambda i: (0, 0)),
            pl.BlockSpec((1, YZC), lambda i: (0, 0)),
        ],
        out_specs=pl.BlockSpec((xblk, YZC), lambda i: (i, 0)),
        compiler_params=pltpu.CompilerParams(
            dimension_semantics=("parallel",),
            vmem_limit_bytes=48 * 1024 * 1024,
        ),
        cost_estimate=cost,
    )(
        jnp.asarray(mult),
        jnp.asarray(phase),
        jnp.asarray(sel, dtype=jnp.bfloat16),
        jnp.asarray(yz_row),
    )

    if x_pad != X:
        enc = enc[:X]
    enc = enc.reshape(1, X, Y, Z, CH)
    # Batch replication as a broadcast in the wrapper: fuses into the consumer
    # (e.g. `x + penc`) instead of paying B x HBM writes in the kernel.
    return jnp.broadcast_to(enc, (B, X, Y, Z, CH))


def _reference_numpy(x, org_channels):
    """Pure-numpy port of PositionalEncoding3D.forward (no caching)."""
    b, X, Y, Z, orig_ch = x.shape
    C = int(np.ceil(org_channels / 6) * 2)
    if C % 2:
        C += 1
    inv_freq = (
        1.0 / (10000.0 ** (np.arange(0, C, 2, dtype=np.float32) / np.float32(C)))
    ).astype(np.float32)
    pos_x = np.arange(X, dtype=np.float32)
    pos_y = np.arange(Y, dtype=np.float32)
    pos_z = np.arange(Z, dtype=np.float32)
    sin_x = np.einsum("i,j->ij", pos_x, inv_freq)
    sin_y = np.einsum("i,j->ij", pos_y, inv_freq)
    sin_z = np.einsum("i,j->ij", pos_z, inv_freq)

    def get_emb(s):
        e = np.stack((np.sin(s), np.cos(s)), axis=-1)
        return e.reshape(s.shape[0], -1)

    emb_x = get_emb(sin_x)[:, None, None, :]
    emb_y = get_emb(sin_y)[None, :, None, :]
    emb_z = get_emb(sin_z)[None, None, :, :]
    emb = np.zeros((X, Y, Z, 3 * C), np.float32)
    emb[:, :, :, :C] = emb_x
    emb[:, :, :, C:2 * C] = emb_y
    emb[:, :, :, 2 * C:] = emb_z
    out = np.broadcast_to(emb[None, :, :, :, :orig_ch], (b, X, Y, Z, orig_ch))
    return out.astype(x.dtype)


if __name__ == "__main__":
    key = jax.random.PRNGKey(0)

    # Lane-dense case: Y*Z*CH = 1024 (multiple of 128).
    B, X, Y, Z, CH = 2, 8, 8, 8, 16
    x = jax.random.normal(key, (B, X, Y, Z, CH), dtype=jnp.float32)
    out = jax.block_until_ready(positional_encoding_3d(x, CH))
    ref = _reference_numpy(np.asarray(x), CH)
    np.testing.assert_allclose(np.asarray(out), ref, rtol=2e-5, atol=2e-5)

    # Ragged case: odd spatial dims, channels not a multiple of 4/6, tiny X,
    # org_ch < 3*C (truncated z region).
    B2, X2, Y2, Z2, CH2 = 1, 5, 3, 7, 10
    x2 = jax.random.normal(
        jax.random.PRNGKey(1), (B2, X2, Y2, Z2, CH2), dtype=jnp.float32
    )
    out2 = jax.block_until_ready(positional_encoding_3d(x2, CH2))
    ref2 = _reference_numpy(np.asarray(x2), CH2)
    np.testing.assert_allclose(np.asarray(out2), ref2, rtol=2e-5, atol=2e-5)

    print("KERNEL_OK")
</pallas_src>

<mosaic_0001>
module attributes {stable_mosaic.version = 11 : i64} {
  func.func @_penc3d_kernel(%arg0: i32, %arg1: memref<1x128xf32, #tpu.memory_space<vmem>>, %arg2: memref<1x128xf32, #tpu.memory_space<vmem>>, %arg3: memref<128x1024xbf16, #tpu.memory_space<vmem>>, %arg4: memref<1x1024xf32, #tpu.memory_space<vmem>>, %arg5: memref<8x1024xf32, #tpu.memory_space<vmem>>) attributes {dimension_semantics = [#tpu.dimension_semantics<parallel>], iteration_bounds = array<i64: 1>, scalar_prefetch = 0 : i64, scratch_operands = 0 : i64, tpu.core_type = #tpu.core_type<tc>, window_params = [{pipeline_mode = #tpu.pipeline_mode<synchronous>, transform_indices = @transform_0, window_bounds = array<i64: 1, 128>}, {pipeline_mode = #tpu.pipeline_mode<synchronous>, transform_indices = @transform_1, window_bounds = array<i64: 1, 128>}, {pipeline_mode = #tpu.pipeline_mode<synchronous>, transform_indices = @transform_2, window_bounds = array<i64: 128, 1024>}, {pipeline_mode = #tpu.pipeline_mode<synchronous>, transform_indices = @transform_3, window_bounds = array<i64: 1, 1024>}, {transform_indices = @transform_4, window_bounds = array<i64: 8, 1024>}]} {
    %c8_i32 = arith.constant 8 : i32
    %0 = arith.muli %arg0, %c8_i32 : i32
    %1 = arith.sitofp %0 : i32 to f32
    %2 = tpu.iota {dimensions = array<i32: 0>} : vector<8x1xi32>
    %3 = arith.sitofp %2 : vector<8x1xi32> to vector<8x1xf32>
    %4 = vector.broadcast %1 : f32 to vector<8x1xf32>
    %5 = arith.addf %4, %3 : vector<8x1xf32>
    %c0 = arith.constant 0 : index
    %c0_0 = arith.constant 0 : index
    %6 = vector.load %arg1[%c0, %c0_0] : memref<1x128xf32, #tpu.memory_space<vmem>>, vector<1x128xf32>
    %7 = vector.broadcast %5 : vector<8x1xf32> to vector<8x128xf32>
    %8 = vector.broadcast %6 : vector<1x128xf32> to vector<8x128xf32>
    %9 = arith.mulf %7, %8 : vector<8x128xf32>
    %c0_1 = arith.constant 0 : index
    %c0_2 = arith.constant 0 : index
    %10 = vector.load %arg2[%c0_1, %c0_2] : memref<1x128xf32, #tpu.memory_space<vmem>>, vector<1x128xf32>
    %11 = vector.broadcast %10 : vector<1x128xf32> to vector<8x128xf32>
    %12 = arith.addf %9, %11 : vector<8x128xf32>
    %13 = math.sin %12 : vector<8x128xf32>
    %14 = arith.truncf %13 : vector<8x128xf32> to vector<8x128xbf16>
    %15 = arith.extf %14 : vector<8x128xbf16> to vector<8x128xf32>
    %16 = arith.subf %13, %15 : vector<8x128xf32>
    %17 = arith.truncf %16 : vector<8x128xf32> to vector<8x128xbf16>
    %c0_3 = arith.constant 0 : index
    %c0_4 = arith.constant 0 : index
    %18 = vector.load %arg3[%c0_3, %c0_4] : memref<128x1024xbf16, #tpu.memory_space<vmem>>, vector<128x1024xbf16>
    %cst = arith.constant dense<0.000000e+00> : vector<8x1024xf32>
    %19 = tpu.matmul %14, %18, %cst {dimension_numbers = #tpu.dot_dimension_numbers<[1], [0], [0], [1], [0, 0, 1, 1], [], []>} : vector<8x128xbf16>, vector<128x1024xbf16>, vector<8x1024xf32> -> vector<8x1024xf32>
    %cst_5 = arith.constant dense<0.000000e+00> : vector<8x1024xf32>
    %20 = tpu.matmul %17, %18, %cst_5 {dimension_numbers = #tpu.dot_dimension_numbers<[1], [0], [0], [1], [0, 0, 1, 1], [], []>} : vector<8x128xbf16>, vector<128x1024xbf16>, vector<8x1024xf32> -> vector<8x1024xf32>
    %21 = arith.addf %19, %20 : vector<8x1024xf32>
    %c0_6 = arith.constant 0 : index
    %c0_7 = arith.constant 0 : index
    %22 = vector.load %arg4[%c0_6, %c0_7] : memref<1x1024xf32, #tpu.memory_space<vmem>>, vector<1x1024xf32>
    %23 = vector.broadcast %22 : vector<1x1024xf32> to vector<8x1024xf32>
    %24 = arith.addf %21, %23 : vector<8x1024xf32>
    %c0_8 = arith.constant 0 : index
    %c0_9 = arith.constant 0 : index
    %25 = vector.load %arg5[%c0_8, %c0_9] : memref<8x1024xf32, #tpu.memory_space<vmem>>, vector<8x1024xf32>
    tpu.vector_store %arg5[%c0_8, %c0_9], %24 {strides = array<i32>} : memref<8x1024xf32, #tpu.memory_space<vmem>>, vector<8x1024xf32>,
    return
  }
  func.func @transform_0(%arg0: i32) -> (i32, i32) {
    %c0_i32 = arith.constant 0 : i32
    %c0_i32_0 = arith.constant 0 : i32
    %c0_i32_1 = arith.constant 0 : i32
    return %c0_i32, %c0_i32_0 : i32, i32
  }
  func.func @transform_1(%arg0: i32) -> (i32, i32) {
    %c0_i32 = arith.constant 0 : i32
    %c0_i32_0 = arith.constant 0 : i32
    %c0_i32_1 = arith.constant 0 : i32
    return %c0_i32, %c0_i32_0 : i32, i32
  }
  func.func @transform_2(%arg0: i32) -> (i32, i32) {
    %c0_i32 = arith.constant 0 : i32
    %c0_i32_0 = arith.constant 0 : i32
    %c0_i32_1 = arith.constant 0 : i32
    return %c0_i32, %c0_i32_0 : i32, i32
  }
  func.func @transform_3(%arg0: i32) -> (i32, i32) {
    %c0_i32 = arith.constant 0 : i32
    %c0_i32_0 = arith.constant 0 : i32
    %c0_i32_1 = arith.constant 0 : i32
    return %c0_i32, %c0_i32_0 : i32, i32
  }
  func.func @transform_4(%arg0: i32) -> (i32, i32) {
    %c0_i32 = arith.constant 0 : i32
    %c0_i32_0 = arith.constant 0 : i32
    return %arg0, %c0_i32 : i32, i32
  }
}

</mosaic_0001>

<llo_original>
// kernel: tpu_custom_call.1
$region0: #{tpu_custom_call.1}
  #allocation0 [shape = 'u32[]', space=smem, size = 0x4, offset = 0x4, fixed_abs, tag = 'smem constant byte address 0x4 - core index']
  #allocation1 [shape = 'u32[144,128]{1,0:T(1,128)}', space=vmem, size = 0x12000, scoped, tag = 'internal scratch']
  %s0 = inlined_call_operand.hbm [shape: f32[1,128], index: 0, kind: input, shape index: {}]
  %s1 = inlined_call_operand.vmem [shape: f32[1,128], index: 1, kind: input, shape index: {}]
  %s2 = inlined_call_operand.hbm [shape: bf16[128,1024], index: 2, kind: input, shape index: {}]
  %s3 = inlined_call_operand.vmem [shape: f32[1,1024], index: 3, kind: input, shape index: {}]
  %s4 = inlined_call_operand.hbm [shape: f32[8,1024], index: 4, kind: output, shape index: {}]
  %s5 = sld [smem:[#allocation0]]
  $region34: #{tpu_custom_call.1} parent=0
    _
  %s7 = ssub.s32 1, %s5
  %s8 = scalar_select 0, %s7, %s5
  $region1: #{tpu_custom_call.1} parent=0
    #allocation2 [shape = 'u8[512]{0}', space=vmem, size = 0x400, scoped, tag = 'input window, operand 0, single buffered']
    #allocation3 [shape = 's32[1]{0}', space=sflag, size = 0x4, scoped, tag = 'scoped memory for tpu_custom_call.1']
    #allocation4 [shape = 's32[1]{0}', space=sflag, size = 0x4, scoped, tag = 'scoped memory for tpu_custom_call.1']
    #allocation5 [shape = 'u8[262144]{0}', space=vmem, size = 0x40000, scoped, tag = 'input window, operand 2, single buffered']
    #allocation6 [shape = 's32[1]{0}', space=sflag, size = 0x4, scoped, tag = 'scoped memory for tpu_custom_call.1']
    #allocation7 [shape = 'u8[32768]{0}', space=vmem, size = 0x8000, scoped, tag = 'output window, operand 0, single buffered']
    %9 = vsyncpa [#allocation3], 0
    %10 = vsyncpa [#allocation6], 0
    %11 = vsyncpa [#allocation4], 0
    // Predicated region
    $region2: #{tpu_custom_call.1} parent=1 // pred_check
      _
    $region3: #{tpu_custom_call.1} parent=1 // pred_check_branch
      %13 = sbr.rel (0) target = $region5
    $region4: #{tpu_custom_call.1} parent=1 // pred_region
      %s15 = ssub.s32 16, 16
      %16 = vsyncadd [#allocation3], %s15
      %s18 = sshll.u32 [#allocation2], 4
      %s19 = int_to_ptr.vmem [resolvable:$true] %s18
      %21 = dma.hbm_to_vmem [thread:$0]  %s0, 16, %s19, [#allocation3]
    $region5: #{tpu_custom_call.1} parent=1 // pred_fallthru
      _
    // Predicated region
    $region6: #{tpu_custom_call.1} parent=1 // pred_check
      _
    $region7: #{tpu_custom_call.1} parent=1 // pred_check_branch
      %23 = sbr.rel (0) target = $region9
    $region8: #{tpu_custom_call.1} parent=1 // pred_region
      _
    $region9: #{tpu_custom_call.1} parent=1 // pred_fallthru
      _
    // Predicated region
    $region10: #{tpu_custom_call.1} parent=1 // pred_check
      _
    $region11: #{tpu_custom_call.1} parent=1 // pred_check_branch
      %25 = sbr.rel (0) target = $region13
    $region12: #{tpu_custom_call.1} parent=1 // pred_region
      %s27 = ssub.s32 8192, 8192
      %28 = vsyncadd [#allocation6], %s27
      %s29 = sshll.u32 [#allocation5], 4
      %s30 = int_to_ptr.vmem [resolvable:$true] %s29
      %35 = dma.hbm_to_vmem [thread:$0]  %s2, 8192, %s30, [#allocation6], 512, 512, 32
    $region13: #{tpu_custom_call.1} parent=1 // pred_fallthru
      _
    // Predicated region
    $region14: #{tpu_custom_call.1} parent=1 // pred_check
      _
    $region15: #{tpu_custom_call.1} parent=1 // pred_check_branch
      %37 = sbr.rel (0) target = $region17
    $region16: #{tpu_custom_call.1} parent=1 // pred_region
      _
    $region17: #{tpu_custom_call.1} parent=1 // pred_fallthru
      _
    // Predicated region
    $region18: #{tpu_custom_call.1} parent=1 // pred_check
      _
    $region19: #{tpu_custom_call.1} parent=1 // pred_check_branch
      %39 = sbr.rel (0) target = $region21
    $region20: #{tpu_custom_call.1} parent=1 // pred_region
      %40 = dma.done [#allocation3], 16
    $region21: #{tpu_custom_call.1} parent=1 // pred_fallthru
      _
    // Predicated region
    $region22: #{tpu_custom_call.1} parent=1 // pred_check
      _
    $region23: #{tpu_custom_call.1} parent=1 // pred_check_branch
      %42 = sbr.rel (0) target = $region25
    $region24: #{tpu_custom_call.1} parent=1 // pred_region
      %43 = dma.done [#allocation6], 8192
    $region25: #{tpu_custom_call.1} parent=1 // pred_fallthru
      _
    %s45 = smul.u32 0, 8
    %s46 = scvt.s32.f32 %s45
    %v47 = vlaneseq
    %v48 = vshrl.u32 %v47, 7
    %v49 = vcvt.s32.f32 %v48
    %v50 = vstv %s46
    %v51 = vadd.f32 %v50, %v49
    %v52 = vld [vmem:[#allocation2] sm:$0x1]
    %v54 = vlaneseq
    %v55 = vshrl.u32 %v54, 7
    %v56 = vsub.s32 0, %v55
    %v57 = vrot.slane %v52, %v56
    %v59 = vmul.f32 %v51, %v57
    %v60 = vld [vmem:[%s1] sm:$0x1]
    %v62 = vlaneseq
    %v63 = vshrl.u32 %v62, 7
    %v64 = vsub.s32 0, %v63
    %v65 = vrot.slane %v60, %v64
    %v67 = vadd.f32 %v59, %v65
    %v68 = vand.u32 2147483647, %v67
    %vm69 = vcmp.le.f32.partialorder %v68, 0.7853982
    %vm70 = vcmp.lt.s32.totalorder %v67, 0
    %v71 = vand.u32 %v67, 2139095040
    %v72 = vshrl.u32 %v71, 23
    %v73 = vsub.s32 %v72, 127
    %v74 = vand.u32 2147483647, %v67
    %v75 = vand.u32 %v74, 8388607
    %v76 = vor.u32 %v75, 8388608
    %v77 = vsub.s32 0, %v76
    %v78 = vadd.s32 %v73, 1
    %vm79 = vcmp.gt.s32.totalorder %v78, 0
    %v80 = vsel %vm79, %v78, 0
    %v81 = vshrl.u32 %v80, 5
    %v82 = vand.u32 %v80, 31
    %v83 = vsub.s32 32, %v82
    %v84 = vshrl.u32 683565275, %v83
    %v85 = vshll.u32 683565275, %v82
    %v86 = vshrl.u32 2475754826, %v83
    %v87 = vor.u32 %v85, %v86
    %v88 = vshll.u32 2475754826, %v82
    %v89 = vshrl.u32 2131351028, %v83
    %v90 = vor.u32 %v88, %v89
    %v91 = vshll.u32 2131351028, %v82
    %v92 = vshrl.u32 2102212464, %v83
    %v93 = vor.u32 %v91, %v92
    %v94 = vshll.u32 2102212464, %v82
    %v95 = vshrl.u32 920167782, %v83
    %v96 = vor.u32 %v94, %v95
    %v97 = vshll.u32 920167782, %v82
    %v98 = vshrl.u32 1326507024, %v83
    %v99 = vor.u32 %v97, %v98
    %vm100 = vcmp.lt.s32.totalorder %v81, 1
    %vm101 = vcmp.lt.s32.totalorder %v81, 2
    %vm102 = vcmp.lt.s32.totalorder %v81, 3
    %vm103 = vcmp.lt.s32.totalorder %v81, 4
    %v104 = vsel %vm100, %v84, %v87
    %v105 = vsel %vm103, %v93, 2102212464
    %v106 = vsel %vm102, %v90, %v105
    %v107 = vsel %vm101, %v104, %v106
    %v108 = vsel %vm100, %v87, %v90
    %v109 = vsel %vm103, %v96, 920167782
    %v110 = vsel %vm102, %v93, %v109
    %v111 = vsel %vm101, %v108, %v110
    %v112 = vsel %vm100, %v90, %v93
    %v113 = vsel %vm103, %v99, 1326507024
    %v114 = vsel %vm102, %v96, %v113
    %v115 = vsel %vm101, %v112, %v114
    %v116 = vshll.u32 %v76, 8
    %v117 = vmul.u32.u64.compose %v116, %v115
    %v118 = vextract.low.u32 %v117
    %v119 = vextract.high.u32 %v117
    %v120 = vmul.u32.u64.compose %v116, %v111
    %v121 = vextract.low.u32 %v120
    %v122 = vextract.high.u32 %v120
    %v123 = vmul.u32 %v116, %v107
    %v124 = vadd.s32 %v119, %v121
    %vm125 = vc.u32 %v119, %v121
    %v126 = vadd.s32 %v122, 1
    %v127 = vsel %vm125, %v126, %v122
    %v128 = vadd.s32 %v123, %v127
    %v129 = vadd.s32 %v128, 536870912
    %v130 = vshrl.u32 %v129, 30
    %v131 = vshll.u32 %v130, 30
    %v132 = vsub.s32 %v128, %v131
    %vm133 = vcmp.lt.s32.totalorder %v132, 0
    %v134 = vsub.s32 0, %v132
    %v135 = vsel %vm133, %v134, %v132
    %v136 = vclz %v135
    %v137 = vsub.s32 %v136, 2
    %vm138 = vcmp.gt.s32.totalorder 0, %v137
    %v139 = vsel %vm138, 0, %v137
    %v140 = vsub.s32 32, %v139
    %v141 = vshll.u32 %v132, %v139
    %v142 = vshrl.u32 %v124, %v140
    %v143 = vor.u32 %v141, %v142
    %v144 = vsub.s32 4294967266, %v139
    %v145 = vadd.s32 %v144, 127
    %v146 = vshll.u32 %v145, 23
    %v147 = vor.u32 4788187, %v146
    %v148 = vand.u32 2147483647, %v147
    %v150 = vcvt.s32.f32 %v143
    %v151 = vmul.f32 %v150, %v148
    %v152 = vxor.u32 %v151, 2147483648
    %v153 = vsel %vm70, %v152, %v151
    %v154 = vsub.s32 4, %v130
    %v155 = vsel %vm70, %v154, %v130
    %v156 = vsel %vm69, %v67, %v153
    %v157 = vsel %vm69, 0, %v155
    %v158 = vcosq.f32.pop %v156
    %v159 = vsinq.f32.pop %v156
    %vm160 = vweird.f32 %v67
    %v161 = vadd.s32 %v157, 3
    %v162 = vand.u32 %v161, 3
    %vm163 = vcmp.lt.s32.totalorder %v162, 2
    %vm164 = vcmp.eq.s32.totalorder %v162, 0
    %v165 = vxor.u32 %v159, 2147483648
    %v166 = vsel %vm164, %v158, %v165
    %vm167 = vcmp.eq.s32.totalorder %v162, 2
    %v168 = vxor.u32 %v158, 2147483648
    %v169 = vsel %vm167, %v168, %v159
    %v170 = vsel %vm163, %v166, %v169
    %v171 = vsel %vm160, nan, %v170
    %v172 = vpack.c.bf16 %v171, %v171
    %v173 = vunpack.c.l.bf16 %v172
    %v174 = vsub.f32 %v171, %v173
    %v175 = vpack.c.bf16 %v174, %v174
    %v176 = vld [vmem:[#allocation5] sm:$0xff]
    %v177 = vld [vmem:[#allocation5 + $0x8] sm:$0xff]
    %v178 = vld [vmem:[#allocation5 + $0x10] sm:$0xff]
    %v179 = vld [vmem:[#allocation5 + $0x18] sm:$0xff]
    %v180 = vld [vmem:[#allocation5 + $0x20] sm:$0xff]
    %v181 = vld [vmem:[#allocation5 + $0x28] sm:$0xff]
    %v182 = vld [vmem:[#allocation5 + $0x30] sm:$0xff]
    %v183 = vld [vmem:[#allocation5 + $0x38] sm:$0xff]
    %v184 = vld [vmem:[#allocation5 + $0x40] sm:$0xff]
    %v185 = vld [vmem:[#allocation5 + $0x48] sm:$0xff]
    %v186 = vld [vmem:[#allocation5 + $0x50] sm:$0xff]
    %v187 = vld [vmem:[#allocation5 + $0x58] sm:$0xff]
    %v188 = vld [vmem:[#allocation5 + $0x60] sm:$0xff]
    %v189 = vld [vmem:[#allocation5 + $0x68] sm:$0xff]
    %v190 = vld [vmem:[#allocation5 + $0x70] sm:$0xff]
    %v191 = vld [vmem:[#allocation5 + $0x78] sm:$0xff]
    %v192 = vld [vmem:[#allocation5 + $0x80] sm:$0xff]
    %v193 = vld [vmem:[#allocation5 + $0x88] sm:$0xff]
    %v194 = vld [vmem:[#allocation5 + $0x90] sm:$0xff]
    %v195 = vld [vmem:[#allocation5 + $0x98] sm:$0xff]
    %v196 = vld [vmem:[#allocation5 + $0xa0] sm:$0xff]
    %v197 = vld [vmem:[#allocation5 + $0xa8] sm:$0xff]
    %v198 = vld [vmem:[#allocation5 + $0xb0] sm:$0xff]
    %v199 = vld [vmem:[#allocation5 + $0xb8] sm:$0xff]
    %v200 = vld [vmem:[#allocation5 + $0xc0] sm:$0xff]
    %v201 = vld [vmem:[#allocation5 + $0xc8] sm:$0xff]
    %v202 = vld [vmem:[#allocation5 + $0xd0] sm:$0xff]
    %v203 = vld [vmem:[#allocation5 + $0xd8] sm:$0xff]
    %v204 = vld [vmem:[#allocation5 + $0xe0] sm:$0xff]
    %v205 = vld [vmem:[#allocation5 + $0xe8] sm:$0xff]
    %v206 = vld [vmem:[#allocation5 + $0xf0] sm:$0xff]
    %v207 = vld [vmem:[#allocation5 + $0xf8] sm:$0xff]
    %v208 = vld [vmem:[#allocation5 + $0x100] sm:$0xff]
    %v209 = vld [vmem:[#allocation5 + $0x108] sm:$0xff]
    %v210 = vld [vmem:[#allocation5 + $0x110] sm:$0xff]
    %v211 = vld [vmem:[#allocation5 + $0x118] sm:$0xff]
    %v212 = vld [vmem:[#allocation5 + $0x120] sm:$0xff]
    %v213 = vld [vmem:[#allocation5 + $0x128] sm:$0xff]
    %v214 = vld [vmem:[#allocation5 + $0x130] sm:$0xff]
    %v215 = vld [vmem:[#allocation5 + $0x138] sm:$0xff]
    %v216 = vld [vmem:[#allocation5 + $0x140] sm:$0xff]
    %v217 = vld [vmem:[#allocation5 + $0x148] sm:$0xff]
    %v218 = vld [vmem:[#allocation5 + $0x150] sm:$0xff]
    %v219 = vld [vmem:[#allocation5 + $0x158] sm:$0xff]
    %v220 = vld [vmem:[#allocation5 + $0x160] sm:$0xff]
    %v221 = vld [vmem:[#allocation5 + $0x168] sm:$0xff]
    %v222 = vld [vmem:[#allocation5 + $0x170] sm:$0xff]
    %v223 = vld [vmem:[#allocation5 + $0x178] sm:$0xff]
    %v224 = vld [vmem:[#allocation5 + $0x180] sm:$0xff]
    %v225 = vld [vmem:[#allocation5 + $0x188] sm:$0xff]
    %v226 = vld [vmem:[#allocation5 + $0x190] sm:$0xff]
    %v227 = vld [vmem:[#allocation5 + $0x198] sm:$0xff]
    %v228 = vld [vmem:[#allocation5 + $0x1a0] sm:$0xff]
    %v229 = vld [vmem:[#allocation5 + $0x1a8] sm:$0xff]
    %v230 = vld [vmem:[#allocation5 + $0x1b0] sm:$0xff]
    %v231 = vld [vmem:[#allocation5 + $0x1b8] sm:$0xff]
    %v232 = vld [vmem:[#allocation5 + $0x1c0] sm:$0xff]
    %v233 = vld [vmem:[#allocation5 + $0x1c8] sm:$0xff]
    %v234 = vld [vmem:[#allocation5 + $0x1d0] sm:$0xff]
    %v235 = vld [vmem:[#allocation5 + $0x1d8] sm:$0xff]
    %v236 = vld [vmem:[#allocation5 + $0x1e0] sm:$0xff]
    %v237 = vld [vmem:[#allocation5 + $0x1e8] sm:$0xff]
    %v238 = vld [vmem:[#allocation5 + $0x1f0] sm:$0xff]
    %v239 = vld [vmem:[#allocation5 + $0x1f8] sm:$0xff]
    %v304 = vunpack.c.l.b16 %v176
    %v305 = vunpack.c.h.b16 %v176
    %v306 = vunpack.c.l.b16 %v177
    %v307 = vunpack.c.h.b16 %v177
    %v308 = vunpack.c.l.b16 %v178
    %v309 = vunpack.c.h.b16 %v178
    %v310 = vunpack.c.l.b16 %v179
    %v311 = vunpack.c.h.b16 %v179
    %v312 = vunpack.c.l.b16 %v180
    %v313 = vunpack.c.h.b16 %v180
    %v314 = vunpack.c.l.b16 %v181
    %v315 = vunpack.c.h.b16 %v181
    %v316 = vunpack.c.l.b16 %v182
    %v317 = vunpack.c.h.b16 %v182
    %v318 = vunpack.c.l.b16 %v183
    %v319 = vunpack.c.h.b16 %v183
    %v320 = vunpack.c.l.b16 %v184
    %v321 = vunpack.c.h.b16 %v184
    %v322 = vunpack.c.l.b16 %v185
    %v323 = vunpack.c.h.b16 %v185
    %v324 = vunpack.c.l.b16 %v186
    %v325 = vunpack.c.h.b16 %v186
    %v326 = vunpack.c.l.b16 %v187
    %v327 = vunpack.c.h.b16 %v187
    %v328 = vunpack.c.l.b16 %v188
    %v329 = vunpack.c.h.b16 %v188
    %v330 = vunpack.c.l.b16 %v189
    %v331 = vunpack.c.h.b16 %v189
    %v332 = vunpack.c.l.b16 %v190
    %v333 = vunpack.c.h.b16 %v190
    %v334 = vunpack.c.l.b16 %v191
    %v335 = vunpack.c.h.b16 %v191
    %v336 = vunpack.c.l.b16 %v192
    %v337 = vunpack.c.h.b16 %v192
    %v338 = vunpack.c.l.b16 %v193
    %v339 = vunpack.c.h.b16 %v193
    %v340 = vunpack.c.l.b16 %v194
    %v341 = vunpack.c.h.b16 %v194
    %v342 = vunpack.c.l.b16 %v195
    %v343 = vunpack.c.h.b16 %v195
    %v344 = vunpack.c.l.b16 %v196
    %v345 = vunpack.c.h.b16 %v196
    %v346 = vunpack.c.l.b16 %v197
    %v347 = vunpack.c.h.b16 %v197
    %v348 = vunpack.c.l.b16 %v198
    %v349 = vunpack.c.h.b16 %v198
    %v350 = vunpack.c.l.b16 %v199
    %v351 = vunpack.c.h.b16 %v199
    %v352 = vunpack.c.l.b16 %v200
    %v353 = vunpack.c.h.b16 %v200
    %v354 = vunpack.c.l.b16 %v201
    %v355 = vunpack.c.h.b16 %v201
    %v356 = vunpack.c.l.b16 %v202
    %v357 = vunpack.c.h.b16 %v202
    %v358 = vunpack.c.l.b16 %v203
    %v359 = vunpack.c.h.b16 %v203
    %v360 = vunpack.c.l.b16 %v204
    %v361 = vunpack.c.h.b16 %v204
    %v362 = vunpack.c.l.b16 %v205
    %v363 = vunpack.c.h.b16 %v205
    %v364 = vunpack.c.l.b16 %v206
    %v365 = vunpack.c.h.b16 %v206
    %v366 = vunpack.c.l.b16 %v207
    %v367 = vunpack.c.h.b16 %v207
    %v368 = vunpack.c.l.b16 %v208
    %v369 = vunpack.c.h.b16 %v208
    %v370 = vunpack.c.l.b16 %v209
    %v371 = vunpack.c.h.b16 %v209
    %v372 = vunpack.c.l.b16 %v210
    %v373 = vunpack.c.h.b16 %v210
    %v374 = vunpack.c.l.b16 %v211
    %v375 = vunpack.c.h.b16 %v211
    %v376 = vunpack.c.l.b16 %v212
    %v377 = vunpack.c.h.b16 %v212
    %v378 = vunpack.c.l.b16 %v213
    %v379 = vunpack.c.h.b16 %v213
    %v380 = vunpack.c.l.b16 %v214
    %v381 = vunpack.c.h.b16 %v214
    %v382 = vunpack.c.l.b16 %v215
    %v383 = vunpack.c.h.b16 %v215
    %v384 = vunpack.c.l.b16 %v216
    %v385 = vunpack.c.h.b16 %v216
    %v386 = vunpack.c.l.b16 %v217
    %v387 = vunpack.c.h.b16 %v217
    %v388 = vunpack.c.l.b16 %v218
    %v389 = vunpack.c.h.b16 %v218
    %v390 = vunpack.c.l.b16 %v219
    %v391 = vunpack.c.h.b16 %v219
    %v392 = vunpack.c.l.b16 %v220
    %v393 = vunpack.c.h.b16 %v220
    %v394 = vunpack.c.l.b16 %v221
    %v395 = vunpack.c.h.b16 %v221
    %v396 = vunpack.c.l.b16 %v222
    %v397 = vunpack.c.h.b16 %v222
    %v398 = vunpack.c.l.b16 %v223
    %v399 = vunpack.c.h.b16 %v223
    %v400 = vunpack.c.l.b16 %v224
    %v401 = vunpack.c.h.b16 %v224
    %v402 = vunpack.c.l.b16 %v225
    %v403 = vunpack.c.h.b16 %v225
    %v404 = vunpack.c.l.b16 %v226
    %v405 = vunpack.c.h.b16 %v226
    %v406 = vunpack.c.l.b16 %v227
    %v407 = vunpack.c.h.b16 %v227
    %v408 = vunpack.c.l.b16 %v228
    %v409 = vunpack.c.h.b16 %v228
    %v410 = vunpack.c.l.b16 %v229
    %v411 = vunpack.c.h.b16 %v229
    %v412 = vunpack.c.l.b16 %v230
    %v413 = vunpack.c.h.b16 %v230
    %v414 = vunpack.c.l.b16 %v231
    %v415 = vunpack.c.h.b16 %v231
    %v416 = vunpack.c.l.b16 %v232
    %v417 = vunpack.c.h.b16 %v232
    %v418 = vunpack.c.l.b16 %v233
    %v419 = vunpack.c.h.b16 %v233
    %v420 = vunpack.c.l.b16 %v234
    %v421 = vunpack.c.h.b16 %v234
    %v422 = vunpack.c.l.b16 %v235
    %v423 = vunpack.c.h.b16 %v235
    %v424 = vunpack.c.l.b16 %v236
    %v425 = vunpack.c.h.b16 %v236
    %v426 = vunpack.c.l.b16 %v237
    %v427 = vunpack.c.h.b16 %v237
    %v428 = vunpack.c.l.b16 %v238
    %v429 = vunpack.c.h.b16 %v238
    %v430 = vunpack.c.l.b16 %v239
    %v431 = vunpack.c.h.b16 %v239
    %v432 = vpack.c.b16 %v312, %v304
    %v433 = vpack.c.b16 %v313, %v305
    %v434 = vpack.c.b16 %v314, %v306
    %v435 = vpack.c.b16 %v315, %v307
    %v436 = vpack.c.b16 %v316, %v308
    %v437 = vpack.c.b16 %v317, %v309
    %v438 = vpack.c.b16 %v318, %v310
    %v439 = vpack.c.b16 %v319, %v311
    %v440 = vpack.c.b16 %v328, %v320
    %v441 = vpack.c.b16 %v329, %v321
    %v442 = vpack.c.b16 %v330, %v322
    %v443 = vpack.c.b16 %v331, %v323
    %v444 = vpack.c.b16 %v332, %v324
    %v445 = vpack.c.b16 %v333, %v325
    %v446 = vpack.c.b16 %v334, %v326
    %v447 = vpack.c.b16 %v335, %v327
    %v448 = vpack.c.b16 %v344, %v336
    %v449 = vpack.c.b16 %v345, %v337
    %v450 = vpack.c.b16 %v346, %v338
    %v451 = vpack.c.b16 %v347, %v339
    %v452 = vpack.c.b16 %v348, %v340
    %v453 = vpack.c.b16 %v349, %v341
    %v454 = vpack.c.b16 %v350, %v342
    %v455 = vpack.c.b16 %v351, %v343
    %v456 = vpack.c.b16 %v360, %v352
    %v457 = vpack.c.b16 %v361, %v353
    %v458 = vpack.c.b16 %v362, %v354
    %v459 = vpack.c.b16 %v363, %v355
    %v460 = vpack.c.b16 %v364, %v356
    %v461 = vpack.c.b16 %v365, %v357
    %v462 = vpack.c.b16 %v366, %v358
    %v463 = vpack.c.b16 %v367, %v359
    %v464 = vpack.c.b16 %v376, %v368
    %v465 = vpack.c.b16 %v377, %v369
    %v466 = vpack.c.b16 %v378, %v370
    %v467 = vpack.c.b16 %v379, %v371
    %v468 = vpack.c.b16 %v380, %v372
    %v469 = vpack.c.b16 %v381, %v373
    %v470 = vpack.c.b16 %v382, %v374
    %v471 = vpack.c.b16 %v383, %v375
    %v472 = vpack.c.b16 %v392, %v384
    %v473 = vpack.c.b16 %v393, %v385
    %v474 = vpack.c.b16 %v394, %v386
    %v475 = vpack.c.b16 %v395, %v387
    %v476 = vpack.c.b16 %v396, %v388
    %v477 = vpack.c.b16 %v397, %v389
    %v478 = vpack.c.b16 %v398, %v390
    %v479 = vpack.c.b16 %v399, %v391
    %v480 = vpack.c.b16 %v408, %v400
    %v481 = vpack.c.b16 %v409, %v401
    %v482 = vpack.c.b16 %v410, %v402
    %v483 = vpack.c.b16 %v411, %v403
    %v484 = vpack.c.b16 %v412, %v404
    %v485 = vpack.c.b16 %v413, %v405
    %v486 = vpack.c.b16 %v414, %v406
    %v487 = vpack.c.b16 %v415, %v407
    %v488 = vpack.c.b16 %v424, %v416
    %v489 = vpack.c.b16 %v425, %v417
    %v490 = vpack.c.b16 %v426, %v418
    %v491 = vpack.c.b16 %v427, %v419
    %v492 = vpack.c.b16 %v428, %v420
    %v493 = vpack.c.b16 %v429, %v421
    %v494 = vpack.c.b16 %v430, %v422
    %v495 = vpack.c.b16 %v431, %v423
    %560 = vmatprep.subr.bf16.mxu0 %v433
    %561 = vmatpush1.bf16.msra.mxu0 %v432
    %562 = vmatprep.subr.bf16.mxu0 %v441
    %563 = vmatpush1.bf16.msra.mxu0 %v440
    %564 = vmatprep.subr.bf16.mxu0 %v449
    %565 = vmatpush1.bf16.msra.mxu0 %v448
    %566 = vmatprep.subr.bf16.mxu0 %v457
    %567 = vmatpush1.bf16.msra.mxu0 %v456
    %568 = vmatprep.subr.bf16.mxu0 %v465
    %569 = vmatpush1.bf16.msra.mxu0 %v464
    %570 = vmatprep.subr.bf16.mxu0 %v473
    %571 = vmatpush1.bf16.msra.mxu0 %v472
    %572 = vmatprep.subr.bf16.mxu0 %v481
    %573 = vmatpush1.bf16.msra.mxu0 %v480
    %574 = vmatprep.subr.bf16.mxu0 %v489
    %575 = vmatpush1.bf16.msra.mxu0 %v488
    %576 = vmatprep.subr.bf16.mxu0 0
    %577 = vmatpush1.bf16.msra.mxu0 0
    %578 = vmatprep.subr.bf16.mxu0 0
    %579 = vmatpush1.bf16.msra.mxu0 0
    %580 = vmatprep.subr.bf16.mxu0 0
    %581 = vmatpush1.bf16.msra.mxu0 0
    %582 = vmatprep.subr.bf16.mxu0 0
    %583 = vmatpush1.bf16.msra.mxu0 0
    %584 = vmatprep.subr.bf16.mxu0 0
    %585 = vmatpush1.bf16.msra.mxu0 0
    %586 = vmatprep.subr.bf16.mxu0 0
    %587 = vmatpush1.bf16.msra.mxu0 0
    %588 = vmatprep.subr.bf16.mxu0 0
    %589 = vmatpush1.bf16.msra.mxu0 0
    %590 = vmatprep.subr.bf16.mxu0 0
    %591 = vmatpush1.bf16.msra.mxu0 0
    %592 = vmatprep.mubr.bf16.mxu0 0
    %593 = vmatmul.mubr.bf16.gmra.mrb[0].mxu0 %v175
    %v594 = vpop.f32.mrb[0].mxu0
    %v595 = vadd.f32 0.0, %v594
    %v596 = vpop.f32.mrb[0].mxu0
    %v597 = vadd.f32 0.0, %v596
    %v598 = vpop.f32.mrb[0].mxu0
    %v599 = vpop.f32.mrb[0].mxu0
    %600 = vdwg.mxu0
    %601 = vmatprep.subr.bf16.mxu0 %v435
    %602 = vmatpush1.bf16.msra.mxu0 %v434
    %603 = vmatprep.subr.bf16.mxu0 %v443
    %604 = vmatpush1.bf16.msra.mxu0 %v442
    %605 = vmatprep.subr.bf16.mxu0 %v451
    %606 = vmatpush1.bf16.msra.mxu0 %v450
    %607 = vmatprep.subr.bf16.mxu0 %v459
    %608 = vmatpush1.bf16.msra.mxu0 %v458
    %609 = vmatprep.subr.bf16.mxu0 %v467
    %610 = vmatpush1.bf16.msra.mxu0 %v466
    %611 = vmatprep.subr.bf16.mxu0 %v475
    %612 = vmatpush1.bf16.msra.mxu0 %v474
    %613 = vmatprep.subr.bf16.mxu0 %v483
    %614 = vmatpush1.bf16.msra.mxu0 %v482
    %615 = vmatprep.subr.bf16.mxu0 %v491
    %616 = vmatpush1.bf16.msra.mxu0 %v490
    %617 = vmatprep.subr.bf16.mxu0 0
    %618 = vmatpush1.bf16.msra.mxu0 0
    %619 = vmatprep.subr.bf16.mxu0 0
    %620 = vmatpush1.bf16.msra.mxu0 0
    %621 = vmatprep.subr.bf16.mxu0 0
    %622 = vmatpush1.bf16.msra.mxu0 0
    %623 = vmatprep.subr.bf16.mxu0 0
    %624 = vmatpush1.bf16.msra.mxu0 0
    %625 = vmatprep.subr.bf16.mxu0 0
    %626 = vmatpush1.bf16.msra.mxu0 0
    %627 = vmatprep.subr.bf16.mxu0 0
    %628 = vmatpush1.bf16.msra.mxu0 0
    %629 = vmatprep.subr.bf16.mxu0 0
    %630 = vmatpush1.bf16.msra.mxu0 0
    %631 = vmatprep.subr.bf16.mxu0 0
    %632 = vmatpush1.bf16.msra.mxu0 0
    %633 = vmatprep.mubr.bf16.mxu0 0
    %634 = vmatmul.mubr.bf16.gmra.mrb[0].mxu0 %v175
    %v635 = vpop.f32.mrb[0].mxu0
    %v636 = vadd.f32 0.0, %v635
    %v637 = vpop.f32.mrb[0].mxu0
    %v638 = vadd.f32 0.0, %v637
    %v639 = vpop.f32.mrb[0].mxu0
    %v640 = vpop.f32.mrb[0].mxu0
    %641 = vdwg.mxu0
    %642 = vmatprep.subr.bf16.mxu0 %v437
    %643 = vmatpush1.bf16.msra.mxu0 %v436
    %644 = vmatprep.subr.bf16.mxu0 %v445
    %645 = vmatpush1.bf16.msra.mxu0 %v444
    %646 = vmatprep.subr.bf16.mxu0 %v453
    %647 = vmatpush1.bf16.msra.mxu0 %v452
    %648 = vmatprep.subr.bf16.mxu0 %v461
    %649 = vmatpush1.bf16.msra.mxu0 %v460
    %650 = vmatprep.subr.bf16.mxu0 %v469
    %651 = vmatpush1.bf16.msra.mxu0 %v468
    %652 = vmatprep.subr.bf16.mxu0 %v477
    %653 = vmatpush1.bf16.msra.mxu0 %v476
    %654 = vmatprep.subr.bf16.mxu0 %v485
    %655 = vmatpush1.bf16.msra.mxu0 %v484
    %656 = vmatprep.subr.bf16.mxu0 %v493
    %657 = vmatpush1.bf16.msra.mxu0 %v492
    %658 = vmatprep.subr.bf16.mxu0 0
    %659 = vmatpush1.bf16.msra.mxu0 0
    %660 = vmatprep.subr.bf16.mxu0 0
    %661 = vmatpush1.bf16.msra.mxu0 0
    %662 = vmatprep.subr.bf16.mxu0 0
    %663 = vmatpush1.bf16.msra.mxu0 0
    %664 = vmatprep.subr.bf16.mxu0 0
    %665 = vmatpush1.bf16.msra.mxu0 0
    %666 = vmatprep.subr.bf16.mxu0 0
    %667 = vmatpush1.bf16.msra.mxu0 0
    %668 = vmatprep.subr.bf16.mxu0 0
    %669 = vmatpush1.bf16.msra.mxu0 0
    %670 = vmatprep.subr.bf16.mxu0 0
    %671 = vmatpush1.bf16.msra.mxu0 0
    %672 = vmatprep.subr.bf16.mxu0 0
    %673 = vmatpush1.bf16.msra.mxu0 0
    %674 = vmatprep.mubr.bf16.mxu0 0
    %675 = vmatmul.mubr.bf16.gmra.mrb[0].mxu0 %v175
    %v676 = vpop.f32.mrb[0].mxu0
    %v677 = vadd.f32 0.0, %v676
    %v678 = vpop.f32.mrb[0].mxu0
    %v679 = vadd.f32 0.0, %v678
    %v680 = vpop.f32.mrb[0].mxu0
    %v681 = vpop.f32.mrb[0].mxu0
    %682 = vdwg.mxu0
    %683 = vmatprep.subr.bf16.mxu0 %v439
    %684 = vmatpush1.bf16.msra.mxu0 %v438
    %685 = vmatprep.subr.bf16.mxu0 %v447
    %686 = vmatpush1.bf16.msra.mxu0 %v446
    %687 = vmatprep.subr.bf16.mxu0 %v455
    %688 = vmatpush1.bf16.msra.mxu0 %v454
    %689 = vmatprep.subr.bf16.mxu0 %v463
    %690 = vmatpush1.bf16.msra.mxu0 %v462
    %691 = vmatprep.subr.bf16.mxu0 %v471
    %692 = vmatpush1.bf16.msra.mxu0 %v470
    %693 = vmatprep.subr.bf16.mxu0 %v479
    %694 = vmatpush1.bf16.msra.mxu0 %v478
    %695 = vmatprep.subr.bf16.mxu0 %v487
    %696 = vmatpush1.bf16.msra.mxu0 %v486
    %697 = vmatprep.subr.bf16.mxu0 %v495
    %698 = vmatpush1.bf16.msra.mxu0 %v494
    %699 = vmatprep.subr.bf16.mxu0 0
    %700 = vmatpush1.bf16.msra.mxu0 0
    %701 = vmatprep.subr.bf16.mxu0 0
    %702 = vmatpush1.bf16.msra.mxu0 0
    %703 = vmatprep.subr.bf16.mxu0 0
    %704 = vmatpush1.bf16.msra.mxu0 0
    %705 = vmatprep.subr.bf16.mxu0 0
    %706 = vmatpush1.bf16.msra.mxu0 0
    %707 = vmatprep.subr.bf16.mxu0 0
    %708 = vmatpush1.bf16.msra.mxu0 0
    %709 = vmatprep.subr.bf16.mxu0 0
    %710 = vmatpush1.bf16.msra.mxu0 0
    %711 = vmatprep.subr.bf16.mxu0 0
    %712 = vmatpush1.bf16.msra.mxu0 0
    %713 = vmatprep.subr.bf16.mxu0 0
    %714 = vmatpush1.bf16.msra.mxu0 0
    %715 = vmatprep.mubr.bf16.mxu0 0
    %716 = vmatmul.mubr.bf16.gmra.mrb[0].mxu0 %v175
    %v717 = vpop.f32.mrb[0].mxu0
    %v718 = vadd.f32 0.0, %v717
    %v719 = vpop.f32.mrb[0].mxu0
    %v720 = vadd.f32 0.0, %v719
    %v721 = vpop.f32.mrb[0].mxu0
    %v722 = vpop.f32.mrb[0].mxu0
    %723 = vdwg.mxu0
    %724 = vmatprep.subr.bf16.mxu0 %v433
    %725 = vmatpush1.bf16.msra.mxu0 %v432
    %726 = vmatprep.subr.bf16.mxu0 %v441
    %727 = vmatpush1.bf16.msra.mxu0 %v440
    %728 = vmatprep.subr.bf16.mxu0 %v449
    %729 = vmatpush1.bf16.msra.mxu0 %v448
    %730 = vmatprep.subr.bf16.mxu0 %v457
    %731 = vmatpush1.bf16.msra.mxu0 %v456
    %732 = vmatprep.subr.bf16.mxu0 %v465
    %733 = vmatpush1.bf16.msra.mxu0 %v464
    %734 = vmatprep.subr.bf16.mxu0 %v473
    %735 = vmatpush1.bf16.msra.mxu0 %v472
    %736 = vmatprep.subr.bf16.mxu0 %v481
    %737 = vmatpush1.bf16.msra.mxu0 %v480
    %738 = vmatprep.subr.bf16.mxu0 %v489
    %739 = vmatpush1.bf16.msra.mxu0 %v488
    %740 = vmatprep.subr.bf16.mxu0 0
    %741 = vmatpush1.bf16.msra.mxu0 0
    %742 = vmatprep.subr.bf16.mxu0 0
    %743 = vmatpush1.bf16.msra.mxu0 0
    %744 = vmatprep.subr.bf16.mxu0 0
    %745 = vmatpush1.bf16.msra.mxu0 0
    %746 = vmatprep.subr.bf16.mxu0 0
    %747 = vmatpush1.bf16.msra.mxu0 0
    %748 = vmatprep.subr.bf16.mxu0 0
    %749 = vmatpush1.bf16.msra.mxu0 0
    %750 = vmatprep.subr.bf16.mxu0 0
    %751 = vmatpush1.bf16.msra.mxu0 0
    %752 = vmatprep.subr.bf16.mxu0 0
    %753 = vmatpush1.bf16.msra.mxu0 0
    %754 = vmatprep.subr.bf16.mxu0 0
    %755 = vmatpush1.bf16.msra.mxu0 0
    %756 = vmatprep.mubr.bf16.mxu0 0
    %757 = vmatmul.mubr.bf16.gmra.mrb[0].mxu0 %v172
    %v758 = vpop.f32.mrb[0].mxu0
    %v759 = vadd.f32 %v595, %v758
    %v760 = vpop.f32.mrb[0].mxu0
    %v761 = vadd.f32 %v597, %v760
    %v762 = vpop.f32.mrb[0].mxu0
    %v763 = vpop.f32.mrb[0].mxu0
    %764 = vdwg.mxu0
    %765 = vmatprep.subr.bf16.mxu0 %v435
    %766 = vmatpush1.bf16.msra.mxu0 %v434
    %767 = vmatprep.subr.bf16.mxu0 %v443
    %768 = vmatpush1.bf16.msra.mxu0 %v442
    %769 = vmatprep.subr.bf16.mxu0 %v451
    %770 = vmatpush1.bf16.msra.mxu0 %v450
    %771 = vmatprep.subr.bf16.mxu0 %v459
    %772 = vmatpush1.bf16.msra.mxu0 %v458
    %773 = vmatprep.subr.bf16.mxu0 %v467
    %774 = vmatpush1.bf16.msra.mxu0 %v466
    %775 = vmatprep.subr.bf16.mxu0 %v475
    %776 = vmatpush1.bf16.msra.mxu0 %v474
    %777 = vmatprep.subr.bf16.mxu0 %v483
    %778 = vmatpush1.bf16.msra.mxu0 %v482
    %779 = vmatprep.subr.bf16.mxu0 %v491
    %780 = vmatpush1.bf16.msra.mxu0 %v490
    %781 = vmatprep.subr.bf16.mxu0 0
    %782 = vmatpush1.bf16.msra.mxu0 0
    %783 = vmatprep.subr.bf16.mxu0 0
    %784 = vmatpush1.bf16.msra.mxu0 0
    %785 = vmatprep.subr.bf16.mxu0 0
    %786 = vmatpush1.bf16.msra.mxu0 0
    %787 = vmatprep.subr.bf16.mxu0 0
    %788 = vmatpush1.bf16.msra.mxu0 0
    %789 = vmatprep.subr.bf16.mxu0 0
    %790 = vmatpush1.bf16.msra.mxu0 0
    %791 = vmatprep.subr.bf16.mxu0 0
    %792 = vmatpush1.bf16.msra.mxu0 0
    %793 = vmatprep.subr.bf16.mxu0 0
    %794 = vmatpush1.bf16.msra.mxu0 0
    %795 = vmatprep.subr.bf16.mxu0 0
    %796 = vmatpush1.bf16.msra.mxu0 0
    %797 = vmatprep.mubr.bf16.mxu0 0
    %798 = vmatmul.mubr.bf16.gmra.mrb[0].mxu0 %v172
    %v799 = vpop.f32.mrb[0].mxu0
    %v800 = vadd.f32 %v636, %v799
    %v801 = vpop.f32.mrb[0].mxu0
    %v802 = vadd.f32 %v638, %v801
    %v803 = vpop.f32.mrb[0].mxu0
    %v804 = vpop.f32.mrb[0].mxu0
    %805 = vdwg.mxu0
    %806 = vmatprep.subr.bf16.mxu0 %v437
    %807 = vmatpush1.bf16.msra.mxu0 %v436
    %808 = vmatprep.subr.bf16.mxu0 %v445
    %809 = vmatpush1.bf16.msra.mxu0 %v444
    %810 = vmatprep.subr.bf16.mxu0 %v453
    %811 = vmatpush1.bf16.msra.mxu0 %v452
    %812 = vmatprep.subr.bf16.mxu0 %v461
    %813 = vmatpush1.bf16.msra.mxu0 %v460
    %814 = vmatprep.subr.bf16.mxu0 %v469
    %815 = vmatpush1.bf16.msra.mxu0 %v468
    %816 = vmatprep.subr.bf16.mxu0 %v477
    %817 = vmatpush1.bf16.msra.mxu0 %v476
    %818 = vmatprep.subr.bf16.mxu0 %v485
    %819 = vmatpush1.bf16.msra.mxu0 %v484
    %820 = vmatprep.subr.bf16.mxu0 %v493
    %821 = vmatpush1.bf16.msra.mxu0 %v492
    %822 = vmatprep.subr.bf16.mxu0 0
    %823 = vmatpush1.bf16.msra.mxu0 0
    %824 = vmatprep.subr.bf16.mxu0 0
    %825 = vmatpush1.bf16.msra.mxu0 0
    %826 = vmatprep.subr.bf16.mxu0 0
    %827 = vmatpush1.bf16.msra.mxu0 0
    %828 = vmatprep.subr.bf16.mxu0 0
    %829 = vmatpush1.bf16.msra.mxu0 0
    %830 = vmatprep.subr.bf16.mxu0 0
    %831 = vmatpush1.bf16.msra.mxu0 0
    %832 = vmatprep.subr.bf16.mxu0 0
    %833 = vmatpush1.bf16.msra.mxu0 0
    %834 = vmatprep.subr.bf16.mxu0 0
    %835 = vmatpush1.bf16.msra.mxu0 0
    %836 = vmatprep.subr.bf16.mxu0 0
    %837 = vmatpush1.bf16.msra.mxu0 0
    %838 = vmatprep.mubr.bf16.mxu0 0
    %839 = vmatmul.mubr.bf16.gmra.mrb[0].mxu0 %v172
    %v840 = vpop.f32.mrb[0].mxu0
    %v841 = vadd.f32 %v677, %v840
    %v842 = vpop.f32.mrb[0].mxu0
    %v843 = vadd.f32 %v679, %v842
    %v844 = vpop.f32.mrb[0].mxu0
    %v845 = vpop.f32.mrb[0].mxu0
    %846 = vdwg.mxu0
    %847 = vmatprep.subr.bf16.mxu0 %v439
    %848 = vmatpush1.bf16.msra.mxu0 %v438
    %849 = vmatprep.subr.bf16.mxu0 %v447
    %850 = vmatpush1.bf16.msra.mxu0 %v446
    %851 = vmatprep.subr.bf16.mxu0 %v455
    %852 = vmatpush1.bf16.msra.mxu0 %v454
    %853 = vmatprep.subr.bf16.mxu0 %v463
    %854 = vmatpush1.bf16.msra.mxu0 %v462
    %855 = vmatprep.subr.bf16.mxu0 %v471
    %856 = vmatpush1.bf16.msra.mxu0 %v470
    %857 = vmatprep.subr.bf16.mxu0 %v479
    %858 = vmatpush1.bf16.msra.mxu0 %v478
    %859 = vmatprep.subr.bf16.mxu0 %v487
    %860 = vmatpush1.bf16.msra.mxu0 %v486
    %861 = vmatprep.subr.bf16.mxu0 %v495
    %862 = vmatpush1.bf16.msra.mxu0 %v494
    %863 = vmatprep.subr.bf16.mxu0 0
    %864 = vmatpush1.bf16.msra.mxu0 0
    %865 = vmatprep.subr.bf16.mxu0 0
    %866 = vmatpush1.bf16.msra.mxu0 0
    %867 = vmatprep.subr.bf16.mxu0 0
    %868 = vmatpush1.bf16.msra.mxu0 0
    %869 = vmatprep.subr.bf16.mxu0 0
    %870 = vmatpush1.bf16.msra.mxu0 0
    %871 = vmatprep.subr.bf16.mxu0 0
    %872 = vmatpush1.bf16.msra.mxu0 0
    %873 = vmatprep.subr.bf16.mxu0 0
    %874 = vmatpush1.bf16.msra.mxu0 0
    %875 = vmatprep.subr.bf16.mxu0 0
    %876 = vmatpush1.bf16.msra.mxu0 0
    %877 = vmatprep.subr.bf16.mxu0 0
    %878 = vmatpush1.bf16.msra.mxu0 0
    %879 = vmatprep.mubr.bf16.mxu0 0
    %880 = vmatmul.mubr.bf16.gmra.mrb[0].mxu0 %v172
    %v881 = vpop.f32.mrb[0].mxu0
    %v882 = vadd.f32 %v718, %v881
    %v883 = vpop.f32.mrb[0].mxu0
    %v884 = vadd.f32 %v720, %v883
    %v885 = vpop.f32.mrb[0].mxu0
    %v886 = vpop.f32.mrb[0].mxu0
    %887 = vdwg.mxu0
    %v888 = vld [vmem:[%s3] sm:$0xff]
    %v890 = vlaneseq
    %v891 = vshrl.u32 %v890, 7
    %v892 = vsub.s32 0, %v891
    %v893 = vrot.slane %v888, %v892
    %v894 = vlaneseq
    %v895 = vshrl.u32 %v894, 7
    %v896 = vsub.s32 1, %v895
    %v897 = vrot.slane %v888, %v896
    %v898 = vlaneseq
    %v899 = vshrl.u32 %v898, 7
    %v900 = vsub.s32 2, %v899
    %v901 = vrot.slane %v888, %v900
    %v902 = vlaneseq
    %v903 = vshrl.u32 %v902, 7
    %v904 = vsub.s32 3, %v903
    %v905 = vrot.slane %v888, %v904
    %v906 = vlaneseq
    %v907 = vshrl.u32 %v906, 7
    %v908 = vsub.s32 4, %v907
    %v909 = vrot.slane %v888, %v908
    %v910 = vlaneseq
    %v911 = vshrl.u32 %v910, 7
    %v912 = vsub.s32 5, %v911
    %v913 = vrot.slane %v888, %v912
    %v914 = vlaneseq
    %v915 = vshrl.u32 %v914, 7
    %v916 = vsub.s32 6, %v915
    %v917 = vrot.slane %v888, %v916
    %v918 = vlaneseq
    %v919 = vshrl.u32 %v918, 7
    %v920 = vsub.s32 7, %v919
    %v921 = vrot.slane %v888, %v920
    %v930 = vadd.f32 %v759, %v893
    %v931 = vadd.f32 %v761, %v897
    %v932 = vadd.f32 %v800, %v901
    %v933 = vadd.f32 %v802, %v905
    %v934 = vadd.f32 %v841, %v909
    %v935 = vadd.f32 %v843, %v913
    %v936 = vadd.f32 %v882, %v917
    %v937 = vadd.f32 %v884, %v921
    %938 = vst [vmem:[#allocation7] sm:$0xff] %v930
    %939 = vst [vmem:[#allocation7 + $0x8] sm:$0xff] %v931
    %940 = vst [vmem:[#allocation7 + $0x10] sm:$0xff] %v932
    %941 = vst [vmem:[#allocation7 + $0x18] sm:$0xff] %v933
    %942 = vst [vmem:[#allocation7 + $0x20] sm:$0xff] %v934
    %943 = vst [vmem:[#allocation7 + $0x28] sm:$0xff] %v935
    %944 = vst [vmem:[#allocation7 + $0x30] sm:$0xff] %v936
    %945 = vst [vmem:[#allocation7 + $0x38] sm:$0xff] %v937
    // Predicated region
    $region26: #{tpu_custom_call.1} parent=1 // pred_check
      _
    $region27: #{tpu_custom_call.1} parent=1 // pred_check_branch
      %947 = sbr.rel (0) target = $region29
    $region28: #{tpu_custom_call.1} parent=1 // pred_region
      %s949 = ssub.s32 1024, 1024
      %950 = vsyncadd [#allocation4], %s949
      %s952 = sshll.u32 [#allocation7], 4
      %s953 = int_to_ptr.vmem [resolvable:$true] %s952
      %955 = dma.vmem_to_hbm [thread:$0]  %s953, 1024, %s4, [#allocation4]
    $region29: #{tpu_custom_call.1} parent=1 // pred_fallthru
      _
    // Predicated region
    $region30: #{tpu_custom_call.1} parent=1 // pred_check
      _
    $region31: #{tpu_custom_call.1} parent=1 // pred_check_branch
      %957 = sbr.rel (0) target = $region33
    $region32: #{tpu_custom_call.1} parent=1 // pred_region
      %958 = dma.done [#allocation4], 1024
    $region33: #{tpu_custom_call.1} parent=1 // pred_fallthru
      _
    %959 = vsyncpa [#allocation3], 1
    %960 = vsyncpa [#allocation6], 1
    %961 = vsyncpa [#allocation4], 1

</llo_original>
